<compile_context>
chip_gen: v6e
topology: v6e:2x2x1
jax: 0.10.0
libtpu: 0.0.40
codegen_flags: <defaults>
</compile_context>

<pallas_src>
import functools

import jax
import jax.numpy as jnp
from jax.experimental import pallas as pl
from jax.experimental.pallas import tpu as pltpu

_LANES = 128
_TILE_BYTES_TARGET = 2 * 1024 * 1024   # ~2 MiB per pipeline buffer
_UNROLL = 8


def _round_up(x, m):
    return (x + m - 1) // m * m


def _std_sums_kernel(shift_ref, x_ref, sum_ref, sq_ref, *,
                     kb_total, kb_per_split, n_sub_full, n_sub_last, unroll):
    """Lane-dense (8,128) partial sum / sum-of-squares of (x - shift).

    Grid = (n_splits, kb_per_split): axis 0 splits the row-block range across
    TensorCores (v7x megacore), axis 1 streams row blocks of that split.
    """
    s = pl.program_id(0)
    k = pl.program_id(1)
    blk = s * kb_per_split + k
    shift = shift_ref[0, 0]

    @pl.when(k == 0)
    def _init():
        sum_ref[...] = jnp.zeros_like(sum_ref)
        sq_ref[...] = jnp.zeros_like(sq_ref)

    def accumulate(n_sub):
        # (8,128) f32 accumulators carried through the loop stay in vregs;
        # only one small VMEM read-modify-write of the output block per step.
        def body(c, carry):
            acc, accsq = carry
            r0 = pl.multiple_of(c * 8, 8)
            chunk = x_ref[pl.ds(r0, 8), :].astype(jnp.float32) - shift
            return acc + chunk, accsq + chunk * chunk

        zero = jnp.zeros((8, _LANES), jnp.float32)
        acc, accsq = jax.lax.fori_loop(0, n_sub, body, (zero, zero),
                                       unroll=min(unroll, n_sub))
        sum_ref[0] += acc
        sq_ref[0] += accsq

    if n_sub_last == n_sub_full:
        @pl.when(blk < kb_total)          # skip over-provisioned trailing blocks
        def _full():
            accumulate(n_sub_full)
    else:
        @pl.when(blk < kb_total - 1)
        def _full():
            accumulate(n_sub_full)

        @pl.when(blk == kb_total - 1)     # partial last row-block (mult. of 8 rows)
        def _tail():
            accumulate(n_sub_last)


@jax.jit
def pallas_std(x):
    """Unbiased (ddof=1) std of all elements of x via a Pallas streaming reduction."""
    n = int(x.size)
    if n <= 1:
        return jnp.float32(jnp.nan)       # torch's unbiased std of <2 elems is NaN

    itemsize = jnp.dtype(x.dtype).itemsize
    sublane = 8 * max(1, 4 // itemsize)   # 8 (f32) / 16 (bf16) / 32 (int8)
    align = sublane * _LANES

    flat = jnp.ravel(x)                   # free for contiguous inputs
    # Per-tensor shift (the first element) makes sumsq - s^2/n well conditioned.
    shift = flat[:1].astype(jnp.float32).reshape(1, 1)

    padded = _round_up(n, align)
    pad = padded - n
    if pad:
        # TODO(synk): sizes not already a multiple of sublane*128 pay one padded
        # copy pass; an in-kernel ragged lane tail would avoid it.
        flat = jnp.pad(flat, (0, pad))
    rows = padded // _LANES
    x2d = flat.reshape(rows, _LANES)      # free: contiguous row-major reshape

    # Tile selection: ~2 MiB per pipeline buffer, sublane aligned.
    row_target = max(sublane,
                     (_TILE_BYTES_TARGET // (_LANES * itemsize)) // sublane * sublane)
    row_tile = min(row_target, rows)
    kb_total = pl.cdiv(rows, row_tile)
    n_splits = 2 if kb_total >= 2 else 1  # v7x: one reduction range per TensorCore
    kb_per_split = pl.cdiv(kb_total, n_splits)
    last_rows = rows - (kb_total - 1) * row_tile
    n_sub_full = row_tile // 8
    n_sub_last = last_rows // 8

    kernel = functools.partial(
        _std_sums_kernel,
        kb_total=kb_total, kb_per_split=kb_per_split,
        n_sub_full=n_sub_full, n_sub_last=n_sub_last, unroll=_UNROLL)

    def x_index_map(s, k):
        # Clamp over-provisioned trailing blocks (their compute is skipped).
        return (jnp.minimum(s * kb_per_split + k, kb_total - 1), 0)

    sums, sqs = pl.pallas_call(
        kernel,
        out_shape=(jax.ShapeDtypeStruct((n_splits, 8, _LANES), jnp.float32),
                   jax.ShapeDtypeStruct((n_splits, 8, _LANES), jnp.float32)),
        grid_spec=pltpu.PrefetchScalarGridSpec(
            num_scalar_prefetch=0,
            grid=(n_splits, kb_per_split),
            in_specs=[
                pl.BlockSpec(memory_space=pltpu.MemorySpace.SMEM),   # shift scalar
                pl.BlockSpec((row_tile, _LANES), x_index_map),
            ],
            out_specs=[
                pl.BlockSpec((1, 8, _LANES), lambda s, k: (s, 0, 0)),
                pl.BlockSpec((1, 8, _LANES), lambda s, k: (s, 0, 0)),
            ],
        ),
        compiler_params=pltpu.CompilerParams(
            dimension_semantics=("parallel", "arbitrary"),
            # ~4 MiB actually used (2x2 MiB double-buffered input + tiny outputs);
            # explicit limit keeps the tile choice valid on v7x (64 MiB physical).
            vmem_limit_bytes=32 * 1024 * 1024,
        ),
    )(shift, x2d)

    sh = shift[0, 0]
    # Remove the zero-pad contribution (pad zeros became (0 - shift) in the kernel).
    s_sh = jnp.sum(sums) + jnp.float32(pad) * sh
    q_sh = jnp.sum(sqs) - jnp.float32(pad) * sh * sh
    nf = jnp.float32(n)
    var = (q_sh - (s_sh * s_sh) / nf) / jnp.float32(n - 1)
    return jnp.sqrt(jnp.maximum(var, 0.0))


class STDMetric:
    """JAX/Pallas port of the PyTorch STDMetric module."""

    def __init__(self):
        self.stdA = []
        self.stdB = []
        self.stdA2B = []
        self.stdB2A = []

    def forward(self, batch_out, batch_data):
        A2B, B2A, *_ = batch_out
        A, B = batch_data
        # Four independent streaming reductions; one device->host transfer.
        stds = jax.device_get(jnp.stack([pallas_std(t) for t in (A, B, A2B, B2A)]))
        self.stdA.append(float(stds[0]))
        self.stdB.append(float(stds[1]))
        self.stdA2B.append(float(stds[2]))
        self.stdB2A.append(float(stds[3]))
        return 0

    __call__ = forward


if __name__ == "__main__":
    key = jax.random.PRNGKey(0)
    kA, kB, kA2B, kB2A = jax.random.split(key, 4)

    # Small NCHW-like shapes: batch=2, channels=4, spatial=16x16.
    shape = (2, 4, 16, 16)
    A = jax.random.normal(kA, shape, jnp.float32) * 1.5 + 0.3
    B = jax.random.normal(kB, shape, jnp.float32) * 0.7 - 0.1
    A2B = jax.random.normal(kA2B, shape, jnp.float32) * 2.0 + 5.0
    B2A = jax.random.normal(kB2A, shape, jnp.float32) * 0.5

    metric = STDMetric()
    ret = metric((A2B, B2A), (A, B))
    assert ret == 0

    stds = jax.block_until_ready(jnp.stack([pallas_std(t) for t in (A, B, A2B, B2A)]))
    refs = jnp.stack([jnp.std(t, ddof=1) for t in (A, B, A2B, B2A)])
    assert jnp.allclose(stds, refs, atol=1e-4, rtol=1e-4), (stds, refs)

    recorded = [metric.stdA[0], metric.stdB[0], metric.stdA2B[0], metric.stdB2A[0]]
    for got, want in zip(recorded, jax.device_get(refs)):
        assert abs(got - float(want)) < 1e-4, (got, float(want))

    # Extra coverage: an unaligned size (host pad path + large mean) and a
    # multi-block tensor exercising the split axis and partial last block.
    kc, kd = jax.random.split(kA, 2)
    C = jax.random.normal(kc, (4, 3, 33, 17), jnp.float32) * 2.0 + 7.0
    D = jax.random.normal(kd, (2, 16, 256, 129), jnp.float32) * 0.3 - 1.0
    for t, tol in ((C, 1e-4), (D, 1e-3)):
        got = float(jax.block_until_ready(pallas_std(t)))
        want = float(jnp.std(t, ddof=1))
        assert abs(got - want) <= tol * max(1.0, abs(want)), (got, want)

    print("KERNEL_OK")
</pallas_src>

<mosaic_0001>
module attributes {stable_mosaic.version = 11 : i64} {
  func.func @_std_sums_kernel(%arg0: i32, %arg1: i32, %arg2: memref<1x1xf32, #tpu.memory_space<smem>>, %arg3: memref<16x128xf32, #tpu.memory_space<vmem>>, %arg4: memref<1x8x128xf32, #tpu.memory_space<vmem>>, %arg5: memref<1x8x128xf32, #tpu.memory_space<vmem>>) attributes {dimension_semantics = [#tpu.dimension_semantics<parallel>, #tpu.dimension_semantics<arbitrary>], iteration_bounds = array<i64: 1, 1>, scalar_prefetch = 0 : i64, scratch_operands = 0 : i64, tpu.core_type = #tpu.core_type<tc>, window_params = [{transform_indices = @transform_0, window_bounds = array<i64: 1, 1>}, {transform_indices = @transform_1, window_bounds = array<i64: 16, 128>}, {transform_indices = @transform_2, window_bounds = array<i64: 1, 8, 128>}, {transform_indices = @transform_3, window_bounds = array<i64: 1, 8, 128>}]} {
    %c1_i32 = arith.constant 1 : i32
    %0 = arith.muli %arg0, %c1_i32 : i32
    %1 = arith.addi %0, %arg1 : i32
    %c0 = arith.constant 0 : index
    %c0_0 = arith.constant 0 : index
    %2 = memref.load %arg2[%c0, %c0_0] : memref<1x1xf32, #tpu.memory_space<smem>>
    %c0_i32 = arith.constant 0 : i32
    %3 = arith.cmpi eq, %arg1, %c0_i32 : i32
    %4 = arith.extui %3 : i1 to i32
    %c0_i32_1 = arith.constant 0 : i32
    %5 = arith.cmpi ne, %4, %c0_i32_1 : i32
    scf.if %5 {
      %cst = arith.constant 0.000000e+00 : f32
      %9 = vector.broadcast %cst : f32 to vector<1x8x128xf32>
      %c0_4 = arith.constant 0 : index
      %c0_5 = arith.constant 0 : index
      %c0_6 = arith.constant 0 : index
      %10 = vector.load %arg4[%c0_4, %c0_5, %c0_6] : memref<1x8x128xf32, #tpu.memory_space<vmem>>, vector<1x8x128xf32>
      tpu.vector_store %arg4[%c0_4, %c0_5, %c0_6], %9 {strides = array<i32>} : memref<1x8x128xf32, #tpu.memory_space<vmem>>, vector<1x8x128xf32>,
      %cst_7 = arith.constant 0.000000e+00 : f32
      %11 = vector.broadcast %cst_7 : f32 to vector<1x8x128xf32>
      %c0_8 = arith.constant 0 : index
      %c0_9 = arith.constant 0 : index
      %c0_10 = arith.constant 0 : index
      %12 = vector.load %arg5[%c0_8, %c0_9, %c0_10] : memref<1x8x128xf32, #tpu.memory_space<vmem>>, vector<1x8x128xf32>
      tpu.vector_store %arg5[%c0_8, %c0_9, %c0_10], %11 {strides = array<i32>} : memref<1x8x128xf32, #tpu.memory_space<vmem>>, vector<1x8x128xf32>,
    } else {
    }
    %c1_i32_2 = arith.constant 1 : i32
    %6 = arith.cmpi slt, %1, %c1_i32_2 : i32
    %7 = arith.extui %6 : i1 to i32
    %c0_i32_3 = arith.constant 0 : i32
    %8 = arith.cmpi ne, %7, %c0_i32_3 : i32
    scf.if %8 {
      %cst = arith.constant 0.000000e+00 : f32
      %9 = vector.broadcast %cst : f32 to vector<8x128xf32>
      %c0_i32_4 = arith.constant 0 : i32
      %c8_i32 = arith.constant 8 : i32
      %10 = arith.muli %c0_i32_4, %c8_i32 : i32
      %11 = tpu.assume_multiple %10, 8 : i32
      %12 = arith.index_cast %11 : i32 to index
      %c0_5 = arith.constant 0 : index
      %13 = vector.load %arg3[%12, %c0_5] : memref<16x128xf32, #tpu.memory_space<vmem>>, vector<8x128xf32>
      %14 = vector.broadcast %2 : f32 to vector<8x128xf32>
      %15 = arith.subf %13, %14 : vector<8x128xf32>
      %16 = arith.addf %9, %15 : vector<8x128xf32>
      %17 = arith.mulf %15, %15 : vector<8x128xf32>
      %18 = arith.addf %9, %17 : vector<8x128xf32>
      %c1_i32_6 = arith.constant 1 : i32
      %c8_i32_7 = arith.constant 8 : i32
      %19 = arith.muli %c1_i32_6, %c8_i32_7 : i32
      %20 = tpu.assume_multiple %19, 8 : i32
      %21 = arith.index_cast %20 : i32 to index
      %c0_8 = arith.constant 0 : index
      %22 = vector.load %arg3[%21, %c0_8] : memref<16x128xf32, #tpu.memory_space<vmem>>, vector<8x128xf32>
      %23 = vector.broadcast %2 : f32 to vector<8x128xf32>
      %24 = arith.subf %22, %23 : vector<8x128xf32>
      %25 = arith.addf %16, %24 : vector<8x128xf32>
      %26 = arith.mulf %24, %24 : vector<8x128xf32>
      %27 = arith.addf %18, %26 : vector<8x128xf32>
      %c2_i32 = arith.constant 2 : i32
      %c0_9 = arith.constant 0 : index
      %c0_10 = arith.constant 0 : index
      %c0_11 = arith.constant 0 : index
      %28 = vector.load %arg4[%c0_9, %c0_10, %c0_11] : memref<1x8x128xf32, #tpu.memory_space<vmem>>, vector<1x8x128xf32>
      %29 = vector.shape_cast %28 : vector<1x8x128xf32> to vector<8x128xf32>
      %30 = arith.addf %29, %25 : vector<8x128xf32>
      %c0_12 = arith.constant 0 : index
      %c0_13 = arith.constant 0 : index
      %c0_14 = arith.constant 0 : index
      %31 = vector.load %arg4[%c0_12, %c0_13, %c0_14] : memref<1x8x128xf32, #tpu.memory_space<vmem>>, vector<1x8x128xf32>
      %32 = vector.shape_cast %31 : vector<1x8x128xf32> to vector<8x128xf32>
      %33 = vector.shape_cast %30 : vector<8x128xf32> to vector<1x8x128xf32>
      tpu.vector_store %arg4[%c0_12, %c0_13, %c0_14], %33 {strides = array<i32>} : memref<1x8x128xf32, #tpu.memory_space<vmem>>, vector<1x8x128xf32>,
      %c0_15 = arith.constant 0 : index
      %c0_16 = arith.constant 0 : index
      %c0_17 = arith.constant 0 : index
      %34 = vector.load %arg5[%c0_15, %c0_16, %c0_17] : memref<1x8x128xf32, #tpu.memory_space<vmem>>, vector<1x8x128xf32>
      %35 = vector.shape_cast %34 : vector<1x8x128xf32> to vector<8x128xf32>
      %36 = arith.addf %35, %27 : vector<8x128xf32>
      %c0_18 = arith.constant 0 : index
      %c0_19 = arith.constant 0 : index
      %c0_20 = arith.constant 0 : index
      %37 = vector.load %arg5[%c0_18, %c0_19, %c0_20] : memref<1x8x128xf32, #tpu.memory_space<vmem>>, vector<1x8x128xf32>
      %38 = vector.shape_cast %37 : vector<1x8x128xf32> to vector<8x128xf32>
      %39 = vector.shape_cast %36 : vector<8x128xf32> to vector<1x8x128xf32>
      tpu.vector_store %arg5[%c0_18, %c0_19, %c0_20], %39 {strides = array<i32>} : memref<1x8x128xf32, #tpu.memory_space<vmem>>, vector<1x8x128xf32>,
    } else {
    }
    return
  }
  func.func @transform_0(%arg0: i32, %arg1: i32) -> (i32, i32) {
    %c0_i32 = arith.constant 0 : i32
    %c0_i32_0 = arith.constant 0 : i32
    %c0_i32_1 = arith.constant 0 : i32
    return %c0_i32, %c0_i32_0 : i32, i32
  }
  func.func @transform_1(%arg0: i32, %arg1: i32) -> (i32, i32) {
    %c1_i32 = arith.constant 1 : i32
    %0 = arith.muli %arg0, %c1_i32 : i32
    %1 = arith.addi %0, %arg1 : i32
    %c0_i32 = arith.constant 0 : i32
    %2 = arith.minsi %1, %c0_i32 : i32
    %c0_i32_0 = arith.constant 0 : i32
    %c0_i32_1 = arith.constant 0 : i32
    return %2, %c0_i32_0 : i32, i32
  }
  func.func @transform_2(%arg0: i32, %arg1: i32) -> (i32, i32, i32) {
    %c0_i32 = arith.constant 0 : i32
    %c0_i32_0 = arith.constant 0 : i32
    %c0_i32_1 = arith.constant 0 : i32
    return %arg0, %c0_i32, %c0_i32_0 : i32, i32, i32
  }
  func.func @transform_3(%arg0: i32, %arg1: i32) -> (i32, i32, i32) {
    %c0_i32 = arith.constant 0 : i32
    %c0_i32_0 = arith.constant 0 : i32
    %c0_i32_1 = arith.constant 0 : i32
    return %arg0, %c0_i32, %c0_i32_0 : i32, i32, i32
  }
}

</mosaic_0001>

<llo_original>
// kernel: pallas_std.1
$region0: #{pallas_std.1}
  #allocation0 [shape = 'u32[]', space=smem, size = 0x4, offset = 0x4, fixed_abs, tag = 'smem constant byte address 0x4 - core index']
  #allocation1 [shape = 'u32[144,128]{1,0:T(1,128)}', space=vmem, size = 0x12000, scoped, tag = 'internal scratch']
  #allocation2 [shape = 'f32[1,1]{1,0:T(1,128)S(6)}', space=smem, size = 0x200, scoped, tag = 'scoped memory for pallas_std.1']
  %s0 = inlined_call_operand.<no memory space> [shape: f32[1,1], index: 0, kind: input, shape index: {}]
  %s1 = inlined_call_operand.vmem [shape: f32[16,128], index: 1, kind: input, shape index: {}]
  %s2 = inlined_call_operand.vmem [shape: f32[1,8,128], index: 2, kind: output, shape index: {0}]
  %s3 = inlined_call_operand.vmem [shape: f32[1,8,128], index: 3, kind: output, shape index: {1}]
  %4 = xla_tuple %s2, %s3
  %s5 = sld [smem:[#allocation0]]
  $region34: #{pallas_std.1} parent=0
    _
  %s7 = ssub.s32 1, %s5
  %s8 = scalar_select 0, %s7, %s5
  %9 = sst [smem:[#allocation2]] %s0
  // Predicated region
  $region2: #{pallas_std.1} parent=0 // pred_check
    _
  $region3: #{pallas_std.1} parent=0 // pred_check_branch
    %11 = sbr.rel (0) target = $region5
  $region4: #{pallas_std.1} parent=0 // pred_region
    _
  $region5: #{pallas_std.1} parent=0 // pred_fallthru
    _
  // Predicated region
  $region6: #{pallas_std.1} parent=0 // pred_check
    _
  $region7: #{pallas_std.1} parent=0 // pred_check_branch
    %13 = sbr.rel (0) target = $region9
  $region8: #{pallas_std.1} parent=0 // pred_region
    %s14 = sadd.s32 0, 0
    %p15 = scmp.lt.s32.totalorder %s14, 0
    %s16 = scalar_select %p15, %s14, 0
    %s17 = smul.u32 2, %s16
    %p18 = scmp.lt.s32.totalorder %s17, 1
    %s19 = scalar_select %p18, %s17, 1
    %s20 = smul.addr %s19, 8
    %s21 = scalar_lea.vmem %s1, %s20
    %s22 = sadd.s32 0, 0
    %p23 = scmp.lt.s32.totalorder %s22, 0
    %s24 = scalar_select %p23, %s22, 0
    %s25 = smul.u32 2, %s24
  $region9: #{pallas_std.1} parent=0 // pred_fallthru
    _
  %s26 = sadd.s32 0, 0
  %p27 = scmp.lt.s32.totalorder %s26, 0
  %s28 = scalar_select %p27, %s26, 0
  %s29 = smul.u32 2, %s28
  %p30 = scmp.lt.s32.totalorder %s29, 1
  %s31 = scalar_select %p30, %s29, 1
  %s32 = smul.addr %s31, 8
  %s33 = scalar_lea.vmem %s1, %s32
  %s34 = sadd.s32 0, 0
  %p35 = scmp.lt.s32.totalorder %s34, 0
  %s36 = scalar_select %p35, %s34, 0
  %s37 = smul.u32 2, %s36
  %p38 = scmp.lt.s32.totalorder %s37, 1
  %s39 = scalar_select %p38, %s37, 1
  %s40 = smul.addr %s39, 8
  %s41 = scalar_lea.vmem %s1, %s40
  %s42 = sadd.s32 0, 0
  %p43 = scmp.lt.s32.totalorder %s42, 0
  %s44 = scalar_select %p43, %s42, 0
  %s45 = smul.u32 2, %s44
  %s46 = sadd.s32 0, 0
  %s47 = sld [smem:[#allocation2]]
  %p48 = scmp.eq.s32.totalorder 0, 0
  // Predicated region
  $region10: #{pallas_std.1} parent=0 // pred_check
    %p49 = pneg %p48
  $region11: #{pallas_std.1} parent=0 // pred_check_branch
    %51 = sbr.rel (%p49) target = $region13
  $region12: #{pallas_std.1} parent=0 // pred_region
    %52 = vst [vmem:[%s2] sm:$0xff] 0.0
    %53 = vst [vmem:[%s3] sm:$0xff] 0.0
  $region13: #{pallas_std.1} parent=0 // pred_fallthru
    _
  %p54 = scmp.lt.s32.totalorder %s46, 1
  // Predicated region
  $region14: #{pallas_std.1} parent=0 // pred_check
    %p55 = pneg %p54
  $region15: #{pallas_std.1} parent=0 // pred_check_branch
    %57 = sbr.rel (%p55) target = $region17
  $region16: #{pallas_std.1} parent=0 // pred_region
    %v58 = vld [vmem:[%s41] sm:$0xff]
    %v59 = vstv %s47
    %v60 = vsub.f32 %v58, %v59
    %v61 = vadd.f32 %v60, 0.0
    %v62 = vmul.f32 %v60, %v60
    %v63 = vadd.f32 %v62, 0.0
    %s64 = scalar_lea.vmem %s41, 8
    %v65 = vld [vmem:[%s64] sm:$0xff]
    %v66 = vsub.f32 %v65, %v59
    %v67 = vadd.f32 %v61, %v66
    %v68 = vmul.f32 %v66, %v66
    %v69 = vadd.f32 %v63, %v68
    %v70 = vld [vmem:[%s2] sm:$0xff]
    %v71 = vadd.f32 %v70, %v67
    %72 = vst [vmem:[%s2] sm:$0xff] %v71
    %v73 = vld [vmem:[%s3] sm:$0xff]
    %v74 = vadd.f32 %v73, %v69
    %75 = vst [vmem:[%s3] sm:$0xff] %v74
  $region17: #{pallas_std.1} parent=0 // pred_fallthru
    _
  // Predicated region
  $region18: #{pallas_std.1} parent=0 // pred_check
    _
  $region19: #{pallas_std.1} parent=0 // pred_check_branch
    %77 = sbr.rel (0) target = $region21
  $region20: #{pallas_std.1} parent=0 // pred_region
    _
  $region21: #{pallas_std.1} parent=0 // pred_fallthru
    _
  // Predicated region
  $region22: #{pallas_std.1} parent=0 // pred_check
    _
  $region23: #{pallas_std.1} parent=0 // pred_check_branch
    %79 = sbr.rel (0) target = $region25
  $region24: #{pallas_std.1} parent=0 // pred_region
    _
  $region25: #{pallas_std.1} parent=0 // pred_fallthru
    _
  // Predicated region
  $region26: #{pallas_std.1} parent=0 // pred_check
    _
  $region27: #{pallas_std.1} parent=0 // pred_check_branch
    %81 = sbr.rel (0) target = $region29
  $region28: #{pallas_std.1} parent=0 // pred_region
    _
  $region29: #{pallas_std.1} parent=0 // pred_fallthru
    _
  // Predicated region
  $region30: #{pallas_std.1} parent=0 // pred_check
    _
  $region31: #{pallas_std.1} parent=0 // pred_check_branch
    %83 = sbr.rel (0) target = $region33
  $region32: #{pallas_std.1} parent=0 // pred_region
    _
  $region33: #{pallas_std.1} parent=0 // pred_fallthru
    _

</llo_original>
